<compile_context>
chip_gen: v7x
topology: tpu7x:2x2x1
jax: 0.10.0
libtpu: 0.0.40
codegen_flags: <defaults>
</compile_context>

<pallas_src>
import jax
import jax.numpy as jnp
from jax.experimental import pallas as pl
from jax.experimental.pallas import tpu as pltpu

BN_EPS = 1e-5          # nn.BatchNorm1d default eps
LEAK = 0.2             # LeakyReLU(0.2)
H1, H2 = 256, 64       # hidden widths of the module


def _gamo_dis_kernel(x_ref, zc_ref, w1x_ref, w1c_ref, w2_ref, p_ref, out_ref):
    """p_ref layout (f32, shape (6, 256)):
         row 0: gamma1 (256)      row 1: beta1 (256)
         row 2: gamma2 (first 64) row 3: beta2 (first 64)
         row 4: w3^T   (first 64) row 5: b3 at column 0
    """
    inv_b = 1.0 / x_ref.shape[0]                  # static batch size

    # ---- Linear(in -> 256): split dot, bf16 operands, f32 accumulate.
    #      (fc1 bias dropped: cancels under training-mode BN mean subtraction.)
    x16 = x_ref[...].astype(jnp.bfloat16)
    zc16 = zc_ref[...].astype(jnp.bfloat16)
    h = (jnp.dot(x16, w1x_ref[...], preferred_element_type=jnp.float32)
         + jnp.dot(zc16, w1c_ref[...], preferred_element_type=jnp.float32))

    # ---- BatchNorm1d(256) training mode (one-pass stats, clamped) + LeakyReLU
    mu = jnp.sum(h, axis=0, keepdims=True) * inv_b
    msq = jnp.sum(h * h, axis=0, keepdims=True) * inv_b
    var = jnp.maximum(msq - mu * mu, 0.0)         # biased var, clamp >= 0
    scale = p_ref[0:1, :] * jax.lax.rsqrt(var + BN_EPS)
    shift = p_ref[1:2, :] - mu * scale
    h = h * scale + shift
    h = jnp.maximum(h, LEAK * h)                  # LeakyReLU(0.2)

    # ---- Linear(256 -> 64) [bias cancels] + BN + LeakyReLU
    h = jnp.dot(h.astype(jnp.bfloat16), w2_ref[...],
                preferred_element_type=jnp.float32)
    mu = jnp.sum(h, axis=0, keepdims=True) * inv_b
    msq = jnp.sum(h * h, axis=0, keepdims=True) * inv_b
    var = jnp.maximum(msq - mu * mu, 0.0)
    scale = p_ref[2:3, 0:H2] * jax.lax.rsqrt(var + BN_EPS)
    shift = p_ref[3:4, 0:H2] - mu * scale
    h = h * scale + shift
    h = jnp.maximum(h, LEAK * h)

    # ---- Linear(64 -> 1): VPU multiply + lane reduce (no padded MXU matmul),
    #      then Sigmoid with approx reciprocal on the EUP.
    logit = jnp.sum(h * p_ref[4:5, 0:H2], axis=-1, keepdims=True) + p_ref[5:6, 0:1]
    out_ref[...] = pl.reciprocal(1.0 + jnp.exp(-logit), approx=True)


def gamo_dis_forward(x, zc, packed):
    """Forward pass of gamo_dis.  `packed` is the output of pack_params()."""
    B = x.shape[0]
    vmem = pl.BlockSpec(memory_space=pltpu.MemorySpace.VMEM)

    out = pl.pallas_call(
        _gamo_dis_kernel,
        out_shape=jax.ShapeDtypeStruct((B, 1), jnp.float32),
        in_specs=[vmem, vmem, vmem, vmem, vmem, vmem],
        out_specs=vmem,
        compiler_params=pltpu.CompilerParams(vmem_limit_bytes=32 * 1024 * 1024),
    )(x, zc, packed["w1x"], packed["w1c"], packed["w2"], packed["small"])

    return out[:, 0]                              # output.squeeze()


def init_params(key, in_dim):
    """PyTorch-style Linear init; BN affine made non-trivial to exercise the fold."""
    ks = jax.random.split(key, 7)

    def linear(k, fan_in, fan_out):
        kw, kb = jax.random.split(k)
        bound = 1.0 / jnp.sqrt(jnp.float32(fan_in))
        w = jax.random.uniform(kw, (fan_in, fan_out), jnp.float32, -bound, bound)
        b = jax.random.uniform(kb, (1, fan_out), jnp.float32, -bound, bound)
        return w, b

    w1, b1 = linear(ks[0], in_dim, H1)
    w2, b2 = linear(ks[1], H1, H2)
    w3, b3 = linear(ks[2], H2, 1)
    # (PyTorch default is weight=1 / bias=0; random values here test the folding)
    g1 = 1.0 + 0.1 * jax.random.normal(ks[3], (1, H1), jnp.float32)
    be1 = 0.1 * jax.random.normal(ks[4], (1, H1), jnp.float32)
    g2 = 1.0 + 0.1 * jax.random.normal(ks[5], (1, H2), jnp.float32)
    be2 = 0.1 * jax.random.normal(ks[6], (1, H2), jnp.float32)
    return dict(w1=w1, b1=b1, g1=g1, be1=be1,
                w2=w2, b2=b2, g2=g2, be2=be2,
                w3=w3, b3=b3)


def pack_params(params, in_dim, n_c):
    """Pack parameters for the kernel.

    * w1 is split into the x-part and zc-part (so the wrapper concat is gone)
      and stored as bfloat16 together with w2 (MXU-native, half the DMA bytes).
    * fc1/fc2 biases are DROPPED: valid ONLY for training-mode BatchNorm (batch
      statistics), where a constant bias cancels against the mean subtraction.
    * All small vectors (BN affines, w3, b3) live in one (6, 256) f32 array.
    """
    assert params["w1"].shape[0] == in_dim + n_c
    w1x = params["w1"][:in_dim].astype(jnp.bfloat16)      # (in_dim, 256)
    w1c = params["w1"][in_dim:].astype(jnp.bfloat16)      # (n_c, 256)
    w2 = params["w2"].astype(jnp.bfloat16)                # (256, 64)

    small = jnp.zeros((6, H1), jnp.float32)
    small = small.at[0, :].set(params["g1"][0])
    small = small.at[1, :].set(params["be1"][0])
    small = small.at[2, :H2].set(params["g2"][0])
    small = small.at[3, :H2].set(params["be2"][0])
    small = small.at[4, :H2].set(params["w3"][:, 0])
    small = small.at[5, 0].set(params["b3"][0, 0])
    return dict(w1x=w1x, w1c=w1c, w2=w2, small=small)


def _reference(x, zc, params):
    """Pure-JAX f32 reference of the PyTorch forward (training-mode BN, full biases)."""
    z = jnp.concatenate([x, zc], axis=-1)
    h = z @ params["w1"] + params["b1"]
    mu = h.mean(0, keepdims=True); var = ((h - mu) ** 2).mean(0, keepdims=True)
    h = (h - mu) * jax.lax.rsqrt(var + BN_EPS) * params["g1"] + params["be1"]
    h = jnp.where(h >= 0, h, LEAK * h)
    h = h @ params["w2"] + params["b2"]
    mu = h.mean(0, keepdims=True); var = ((h - mu) ** 2).mean(0, keepdims=True)
    h = (h - mu) * jax.lax.rsqrt(var + BN_EPS) * params["g2"] + params["be2"]
    h = jnp.where(h >= 0, h, LEAK * h)
    logits = h @ params["w3"] + params["b3"]
    return jax.nn.sigmoid(logits)[:, 0]          # squeeze()


if __name__ == "__main__":
    key = jax.random.PRNGKey(0)
    input_dim, n_c, B = 48, 4, 8                 # small stand-ins (default 784/10)

    k_param, kx, kl = jax.random.split(key, 3)
    params = init_params(k_param, input_dim + n_c)
    packed = pack_params(params, input_dim, n_c)

    x = jax.random.normal(kx, (B, input_dim), jnp.float32)
    labels = jax.random.randint(kl, (B,), 0, n_c)
    zc = jax.nn.one_hot(labels, n_c, dtype=jnp.float32)

    out = gamo_dis_forward(x, zc, packed)
    out = jax.block_until_ready(out)

    ref = _reference(x, zc, params)
    assert out.shape == (B,)
    # tolerance accounts for bf16 matmul operands + approx reciprocal epilogue
    assert bool(jnp.allclose(out, ref, atol=2e-2, rtol=2e-2)), (out, ref)
    print("KERNEL_OK")
</pallas_src>

<mosaic_0001>
module attributes {stable_mosaic.version = 11 : i64} {
  func.func @_gamo_dis_kernel(%arg0: memref<8x48xf32, #tpu.memory_space<vmem>>, %arg1: memref<8x4xf32, #tpu.memory_space<vmem>>, %arg2: memref<48x256xbf16, #tpu.memory_space<vmem>>, %arg3: memref<4x256xbf16, #tpu.memory_space<vmem>>, %arg4: memref<256x64xbf16, #tpu.memory_space<vmem>>, %arg5: memref<6x256xf32, #tpu.memory_space<vmem>>, %arg6: memref<8x1xf32, #tpu.memory_space<vmem>>) attributes {dimension_semantics = [], scalar_prefetch = 0 : i64, scratch_operands = 0 : i64, tpu.core_type = #tpu.core_type<tc>} {
    %c0 = arith.constant 0 : index
    %c0_0 = arith.constant 0 : index
    %0 = vector.load %arg0[%c0, %c0_0] : memref<8x48xf32, #tpu.memory_space<vmem>>, vector<8x48xf32>
    %1 = arith.truncf %0 : vector<8x48xf32> to vector<8x48xbf16>
    %c0_1 = arith.constant 0 : index
    %c0_2 = arith.constant 0 : index
    %2 = vector.load %arg1[%c0_1, %c0_2] : memref<8x4xf32, #tpu.memory_space<vmem>>, vector<8x4xf32>
    %3 = arith.truncf %2 : vector<8x4xf32> to vector<8x4xbf16>
    %c0_3 = arith.constant 0 : index
    %c0_4 = arith.constant 0 : index
    %4 = vector.load %arg2[%c0_3, %c0_4] : memref<48x256xbf16, #tpu.memory_space<vmem>>, vector<48x256xbf16>
    %cst = arith.constant dense<0.000000e+00> : vector<8x256xf32>
    %5 = tpu.matmul %1, %4, %cst {dimension_numbers = #tpu.dot_dimension_numbers<[1], [0], [0], [1], [0, 0, 1, 1], [], []>} : vector<8x48xbf16>, vector<48x256xbf16>, vector<8x256xf32> -> vector<8x256xf32>
    %c0_5 = arith.constant 0 : index
    %c0_6 = arith.constant 0 : index
    %6 = vector.load %arg3[%c0_5, %c0_6] : memref<4x256xbf16, #tpu.memory_space<vmem>>, vector<4x256xbf16>
    %cst_7 = arith.constant dense<0.000000e+00> : vector<8x256xf32>
    %7 = tpu.matmul %3, %6, %cst_7 {dimension_numbers = #tpu.dot_dimension_numbers<[1], [0], [0], [1], [0, 0, 1, 1], [], []>} : vector<8x4xbf16>, vector<4x256xbf16>, vector<8x256xf32> -> vector<8x256xf32>
    %8 = arith.addf %5, %7 : vector<8x256xf32>
    %cst_8 = arith.constant dense<0.000000e+00> : vector<256xf32>
    %9 = vector.multi_reduction <add>, %8, %cst_8 [0] : vector<8x256xf32> to vector<256xf32>
    %10 = vector.shape_cast %9 : vector<256xf32> to vector<1x256xf32>
    %cst_9 = arith.constant 1.250000e-01 : f32
    %11 = vector.broadcast %cst_9 : f32 to vector<1x256xf32>
    %12 = arith.mulf %10, %11 : vector<1x256xf32>
    %13 = arith.mulf %8, %8 : vector<8x256xf32>
    %cst_10 = arith.constant dense<0.000000e+00> : vector<256xf32>
    %14 = vector.multi_reduction <add>, %13, %cst_10 [0] : vector<8x256xf32> to vector<256xf32>
    %15 = vector.shape_cast %14 : vector<256xf32> to vector<1x256xf32>
    %cst_11 = arith.constant 1.250000e-01 : f32
    %16 = vector.broadcast %cst_11 : f32 to vector<1x256xf32>
    %17 = arith.mulf %15, %16 : vector<1x256xf32>
    %18 = arith.mulf %12, %12 : vector<1x256xf32>
    %19 = arith.subf %17, %18 : vector<1x256xf32>
    %cst_12 = arith.constant 0.000000e+00 : f32
    %20 = vector.broadcast %cst_12 : f32 to vector<1x256xf32>
    %21 = arith.maximumf %19, %20 : vector<1x256xf32>
    %c0_13 = arith.constant 0 : index
    %c0_14 = arith.constant 0 : index
    %22 = vector.load %arg5[%c0_13, %c0_14] : memref<6x256xf32, #tpu.memory_space<vmem>>, vector<1x256xf32>
    %cst_15 = arith.constant 9.99999974E-6 : f32
    %23 = vector.broadcast %cst_15 : f32 to vector<1x256xf32>
    %24 = arith.addf %21, %23 : vector<1x256xf32>
    %25 = math.rsqrt %24 : vector<1x256xf32>
    %26 = arith.mulf %22, %25 : vector<1x256xf32>
    %c1 = arith.constant 1 : index
    %c0_16 = arith.constant 0 : index
    %27 = vector.load %arg5[%c1, %c0_16] : memref<6x256xf32, #tpu.memory_space<vmem>>, vector<1x256xf32>
    %28 = arith.mulf %12, %26 : vector<1x256xf32>
    %29 = arith.subf %27, %28 : vector<1x256xf32>
    %30 = vector.broadcast %26 : vector<1x256xf32> to vector<8x256xf32>
    %31 = arith.mulf %8, %30 : vector<8x256xf32>
    %32 = vector.broadcast %29 : vector<1x256xf32> to vector<8x256xf32>
    %33 = arith.addf %31, %32 : vector<8x256xf32>
    %cst_17 = arith.constant 2.000000e-01 : f32
    %34 = vector.broadcast %cst_17 : f32 to vector<8x256xf32>
    %35 = arith.mulf %34, %33 : vector<8x256xf32>
    %36 = arith.maximumf %33, %35 : vector<8x256xf32>
    %37 = arith.truncf %36 : vector<8x256xf32> to vector<8x256xbf16>
    %c0_18 = arith.constant 0 : index
    %c0_19 = arith.constant 0 : index
    %38 = vector.load %arg4[%c0_18, %c0_19] : memref<256x64xbf16, #tpu.memory_space<vmem>>, vector<256x64xbf16>
    %cst_20 = arith.constant dense<0.000000e+00> : vector<8x64xf32>
    %39 = tpu.matmul %37, %38, %cst_20 {dimension_numbers = #tpu.dot_dimension_numbers<[1], [0], [0], [1], [0, 0, 1, 1], [], []>} : vector<8x256xbf16>, vector<256x64xbf16>, vector<8x64xf32> -> vector<8x64xf32>
    %cst_21 = arith.constant dense<0.000000e+00> : vector<64xf32>
    %40 = vector.multi_reduction <add>, %39, %cst_21 [0] : vector<8x64xf32> to vector<64xf32>
    %41 = vector.shape_cast %40 : vector<64xf32> to vector<1x64xf32>
    %cst_22 = arith.constant 1.250000e-01 : f32
    %42 = vector.broadcast %cst_22 : f32 to vector<1x64xf32>
    %43 = arith.mulf %41, %42 : vector<1x64xf32>
    %44 = arith.mulf %39, %39 : vector<8x64xf32>
    %cst_23 = arith.constant dense<0.000000e+00> : vector<64xf32>
    %45 = vector.multi_reduction <add>, %44, %cst_23 [0] : vector<8x64xf32> to vector<64xf32>
    %46 = vector.shape_cast %45 : vector<64xf32> to vector<1x64xf32>
    %cst_24 = arith.constant 1.250000e-01 : f32
    %47 = vector.broadcast %cst_24 : f32 to vector<1x64xf32>
    %48 = arith.mulf %46, %47 : vector<1x64xf32>
    %49 = arith.mulf %43, %43 : vector<1x64xf32>
    %50 = arith.subf %48, %49 : vector<1x64xf32>
    %cst_25 = arith.constant 0.000000e+00 : f32
    %51 = vector.broadcast %cst_25 : f32 to vector<1x64xf32>
    %52 = arith.maximumf %50, %51 : vector<1x64xf32>
    %c2 = arith.constant 2 : index
    %c0_26 = arith.constant 0 : index
    %53 = vector.load %arg5[%c2, %c0_26] : memref<6x256xf32, #tpu.memory_space<vmem>>, vector<1x64xf32>
    %cst_27 = arith.constant 9.99999974E-6 : f32
    %54 = vector.broadcast %cst_27 : f32 to vector<1x64xf32>
    %55 = arith.addf %52, %54 : vector<1x64xf32>
    %56 = math.rsqrt %55 : vector<1x64xf32>
    %57 = arith.mulf %53, %56 : vector<1x64xf32>
    %c3 = arith.constant 3 : index
    %c0_28 = arith.constant 0 : index
    %58 = vector.load %arg5[%c3, %c0_28] : memref<6x256xf32, #tpu.memory_space<vmem>>, vector<1x64xf32>
    %59 = arith.mulf %43, %57 : vector<1x64xf32>
    %60 = arith.subf %58, %59 : vector<1x64xf32>
    %61 = vector.broadcast %57 : vector<1x64xf32> to vector<8x64xf32>
    %62 = arith.mulf %39, %61 : vector<8x64xf32>
    %63 = vector.broadcast %60 : vector<1x64xf32> to vector<8x64xf32>
    %64 = arith.addf %62, %63 : vector<8x64xf32>
    %cst_29 = arith.constant 2.000000e-01 : f32
    %65 = vector.broadcast %cst_29 : f32 to vector<8x64xf32>
    %66 = arith.mulf %65, %64 : vector<8x64xf32>
    %67 = arith.maximumf %64, %66 : vector<8x64xf32>
    %c4 = arith.constant 4 : index
    %c0_30 = arith.constant 0 : index
    %68 = vector.load %arg5[%c4, %c0_30] : memref<6x256xf32, #tpu.memory_space<vmem>>, vector<1x64xf32>
    %69 = vector.broadcast %68 : vector<1x64xf32> to vector<8x64xf32>
    %70 = arith.mulf %67, %69 : vector<8x64xf32>
    %cst_31 = arith.constant dense<0.000000e+00> : vector<8xf32>
    %71 = vector.multi_reduction <add>, %70, %cst_31 [1] : vector<8x64xf32> to vector<8xf32>
    %72 = vector.shape_cast %71 : vector<8xf32> to vector<8x1xf32>
    %c5 = arith.constant 5 : index
    %c0_32 = arith.constant 0 : index
    %73 = vector.load %arg5[%c5, %c0_32] : memref<6x256xf32, #tpu.memory_space<vmem>>, vector<1x1xf32>
    %74 = vector.broadcast %73 : vector<1x1xf32> to vector<8x1xf32>
    %75 = arith.addf %72, %74 : vector<8x1xf32>
    %cst_33 = arith.constant 0.000000e+00 : f32
    %76 = vector.broadcast %cst_33 : f32 to vector<8x1xf32>
    %77 = arith.subf %76, %75 : vector<8x1xf32>
    %78 = math.exp %77 : vector<8x1xf32>
    %cst_34 = arith.constant 1.000000e+00 : f32
    %79 = vector.broadcast %cst_34 : f32 to vector<8x1xf32>
    %80 = arith.addf %79, %78 : vector<8x1xf32>
    %81 = tpu.reciprocal %80 {approx = true} : vector<8x1xf32> -> vector<8x1xf32>
    %c0_35 = arith.constant 0 : index
    %c0_36 = arith.constant 0 : index
    %82 = vector.load %arg6[%c0_35, %c0_36] : memref<8x1xf32, #tpu.memory_space<vmem>>, vector<8x1xf32>
    tpu.vector_store %arg6[%c0_35, %c0_36], %81 {strides = array<i32>} : memref<8x1xf32, #tpu.memory_space<vmem>>, vector<8x1xf32>,
    return
  }
}

</mosaic_0001>

<llo_original>
// kernel: tpu_custom_call.1
$region0: #{tpu_custom_call.1}
  #allocation0 [shape = 'u32[]', space=smem, size = 0x4, offset = 0x4, fixed_abs, tag = 'smem constant byte address 0x4 - core index']
  #allocation1 [shape = 'u32[144,128]{1,0:T(1,128)}', space=vmem, size = 0x12000, scoped, tag = 'internal scratch']
  %s0 = inlined_call_operand.vmem [shape: f32[8,48], index: 0, kind: input, shape index: {}]
  %s1 = inlined_call_operand.vmem [shape: f32[8,4], index: 1, kind: input, shape index: {}]
  %s2 = inlined_call_operand.vmem [shape: bf16[48,256], index: 2, kind: input, shape index: {}]
  %s3 = inlined_call_operand.vmem [shape: bf16[4,256], index: 3, kind: input, shape index: {}]
  %s4 = inlined_call_operand.vmem [shape: bf16[256,64], index: 4, kind: input, shape index: {}]
  %s5 = inlined_call_operand.vmem [shape: f32[6,256], index: 5, kind: input, shape index: {}]
  %s6 = inlined_call_operand.vmem [shape: f32[8,1], index: 6, kind: output, shape index: {}]
  %s7 = sld [smem:[#allocation0]]
  $region34: #{tpu_custom_call.1} parent=0
    _
  %s9 = ssub.s32 1, %s7
  %s10 = scalar_select 0, %s9, %s7
  // Predicated region
  $region2: #{tpu_custom_call.1} parent=0 // pred_check
    _
  $region3: #{tpu_custom_call.1} parent=0 // pred_check_branch
    %12 = sbr.rel (0) target = $region5
  $region4: #{tpu_custom_call.1} parent=0 // pred_region
    _
  $region5: #{tpu_custom_call.1} parent=0 // pred_fallthru
    _
  // Predicated region
  $region6: #{tpu_custom_call.1} parent=0 // pred_check
    _
  $region7: #{tpu_custom_call.1} parent=0 // pred_check_branch
    %14 = sbr.rel (0) target = $region9
  $region8: #{tpu_custom_call.1} parent=0 // pred_region
    _
  $region9: #{tpu_custom_call.1} parent=0 // pred_fallthru
    _
  // Predicated region
  $region10: #{tpu_custom_call.1} parent=0 // pred_check
    _
  $region11: #{tpu_custom_call.1} parent=0 // pred_check_branch
    %16 = sbr.rel (0) target = $region13
  $region12: #{tpu_custom_call.1} parent=0 // pred_region
    _
  $region13: #{tpu_custom_call.1} parent=0 // pred_fallthru
    _
  // Predicated region
  $region14: #{tpu_custom_call.1} parent=0 // pred_check
    _
  $region15: #{tpu_custom_call.1} parent=0 // pred_check_branch
    %18 = sbr.rel (0) target = $region17
  $region16: #{tpu_custom_call.1} parent=0 // pred_region
    _
  $region17: #{tpu_custom_call.1} parent=0 // pred_fallthru
    _
  // Predicated region
  $region18: #{tpu_custom_call.1} parent=0 // pred_check
    _
  $region19: #{tpu_custom_call.1} parent=0 // pred_check_branch
    %20 = sbr.rel (0) target = $region21
  $region20: #{tpu_custom_call.1} parent=0 // pred_region
    _
  $region21: #{tpu_custom_call.1} parent=0 // pred_fallthru
    _
  // Predicated region
  $region22: #{tpu_custom_call.1} parent=0 // pred_check
    _
  $region23: #{tpu_custom_call.1} parent=0 // pred_check_branch
    %22 = sbr.rel (0) target = $region25
  $region24: #{tpu_custom_call.1} parent=0 // pred_region
    _
  $region25: #{tpu_custom_call.1} parent=0 // pred_fallthru
    _
  %v24 = vld [vmem:[%s0] sm:$0xff]
  %v25 = vpack.c.bf16 %v24, %v24
  %v26 = vld [vmem:[%s1] sm:$0xff]
  %v27 = vpack.c.bf16 %v26, %v26
  %v28 = vld [vmem:[%s2] sm:$0xff]
  %v29 = vld [vmem:[%s2 + $0x8] sm:$0xff]
  %v30 = vld [vmem:[%s2 + $0x10] sm:$0xff]
  %v31 = vld [vmem:[%s2 + $0x18] sm:$0xff]
  %v32 = vld [vmem:[%s2 + $0x20] sm:$0xff]
  %v33 = vld [vmem:[%s2 + $0x28] sm:$0xff]
  %v34 = vld [vmem:[%s3] sm:$0xf]
  %v37 = vunpack.c.l.s4 1983009808
  %v38 = vunpack.c.0.s8 %v37
  %v39 = vlaneseq
  %v40 = vshrl.u32 %v39, 7
  %v41 = vsub.s32 %v38, %v40
  %v42 = vrot.slane %v34, %v41
  %v43 = vcombine.high %v42, %v42
  %vm44 = vcmask 31744
  %v46 = vsel %vm44, %v27, 0
  %vm48 = vcmask 1041408
  %v50 = vsel %vm48, %v42, 0
  %v53 = vsel %vm48, %v43, 0
  %55 = vmatprep.subr.bf16.mxu0 %v53
  %56 = vmatpush1.bf16.msra.mxu0 %v50
  %57 = vmatprep.subr.bf16.mxu0 0
  %58 = vmatpush1.bf16.msra.mxu0 0
  %59 = vmatprep.subr.bf16.mxu0 0
  %60 = vmatpush1.bf16.msra.mxu0 0
  %61 = vmatprep.subr.bf16.mxu0 0
  %62 = vmatpush1.bf16.msra.mxu0 0
  %63 = vmatprep.subr.bf16.mxu0 0
  %64 = vmatpush1.bf16.msra.mxu0 0
  %65 = vmatprep.subr.bf16.mxu0 0
  %66 = vmatpush1.bf16.msra.mxu0 0
  %67 = vmatprep.subr.bf16.mxu0 0
  %68 = vmatpush1.bf16.msra.mxu0 0
  %69 = vmatprep.subr.bf16.mxu0 0
  %70 = vmatpush1.bf16.msra.mxu0 0
  %71 = vmatprep.subr.bf16.mxu0 0
  %72 = vmatpush1.bf16.msra.mxu0 0
  %73 = vmatprep.subr.bf16.mxu0 0
  %74 = vmatpush1.bf16.msra.mxu0 0
  %75 = vmatprep.subr.bf16.mxu0 0
  %76 = vmatpush1.bf16.msra.mxu0 0
  %77 = vmatprep.subr.bf16.mxu0 0
  %78 = vmatpush1.bf16.msra.mxu0 0
  %79 = vmatprep.subr.bf16.mxu0 0
  %80 = vmatpush1.bf16.msra.mxu0 0
  %81 = vmatprep.subr.bf16.mxu0 0
  %82 = vmatpush1.bf16.msra.mxu0 0
  %83 = vmatprep.subr.bf16.mxu0 0
  %84 = vmatpush1.bf16.msra.mxu0 0
  %85 = vmatprep.subr.bf16.mxu0 0
  %86 = vmatpush1.bf16.msra.mxu0 0
  %87 = vmatprep.mubr.bf16.mxu0 0
  %88 = vmatmul.mubr.bf16.gmra.mrb[0].mxu0 %v46
  %v89 = vpop.f32.mrb[0].mxu0
  %v90 = vadd.f32 0.0, %v89
  %v91 = vpop.f32.mrb[0].mxu0
  %v92 = vadd.f32 0.0, %v91
  %v93 = vpop.f32.mrb[0].mxu0
  %v94 = vpop.f32.mrb[0].mxu0
  %95 = vdwg.mxu0
  %v102 = vunpack.c.l.b16 %v28
  %v103 = vunpack.c.h.b16 %v28
  %v104 = vunpack.c.l.b16 %v29
  %v105 = vunpack.c.h.b16 %v29
  %v106 = vunpack.c.l.b16 %v30
  %v107 = vunpack.c.h.b16 %v30
  %v108 = vunpack.c.l.b16 %v31
  %v109 = vunpack.c.h.b16 %v31
  %v110 = vunpack.c.l.b16 %v32
  %v111 = vunpack.c.h.b16 %v32
  %v112 = vunpack.c.l.b16 %v33
  %v113 = vunpack.c.h.b16 %v33
  %v114 = vpack.c.b16 %v104, %v102
  %v115 = vpack.c.b16 %v105, %v103
  %v116 = vpack.c.b16 %v108, %v106
  %v117 = vpack.c.b16 %v109, %v107
  %v118 = vpack.c.b16 %v112, %v110
  %v119 = vpack.c.b16 %v113, %v111
  %vm126 = vcmask 392192
  %v128 = vsel %vm126, %v25, 0
  %130 = vmatprep.subr.bf16.mxu0 %v115
  %131 = vmatpush1.bf16.msra.mxu0 %v114
  %132 = vmatprep.subr.bf16.mxu0 %v117
  %133 = vmatpush1.bf16.msra.mxu0 %v116
  %134 = vmatprep.subr.bf16.mxu0 %v119
  %135 = vmatpush1.bf16.msra.mxu0 %v118
  %136 = vmatprep.subr.bf16.mxu0 0
  %137 = vmatpush1.bf16.msra.mxu0 0
  %138 = vmatprep.subr.bf16.mxu0 0
  %139 = vmatpush1.bf16.msra.mxu0 0
  %140 = vmatprep.subr.bf16.mxu0 0
  %141 = vmatpush1.bf16.msra.mxu0 0
  %142 = vmatprep.subr.bf16.mxu0 0
  %143 = vmatpush1.bf16.msra.mxu0 0
  %144 = vmatprep.subr.bf16.mxu0 0
  %145 = vmatpush1.bf16.msra.mxu0 0
  %146 = vmatprep.subr.bf16.mxu0 0
  %147 = vmatpush1.bf16.msra.mxu0 0
  %148 = vmatprep.subr.bf16.mxu0 0
  %149 = vmatpush1.bf16.msra.mxu0 0
  %150 = vmatprep.subr.bf16.mxu0 0
  %151 = vmatpush1.bf16.msra.mxu0 0
  %152 = vmatprep.subr.bf16.mxu0 0
  %153 = vmatpush1.bf16.msra.mxu0 0
  %154 = vmatprep.subr.bf16.mxu0 0
  %155 = vmatpush1.bf16.msra.mxu0 0
  %156 = vmatprep.subr.bf16.mxu0 0
  %157 = vmatpush1.bf16.msra.mxu0 0
  %158 = vmatprep.subr.bf16.mxu0 0
  %159 = vmatpush1.bf16.msra.mxu0 0
  %160 = vmatprep.subr.bf16.mxu0 0
  %161 = vmatpush1.bf16.msra.mxu0 0
  %162 = vmatprep.mubr.bf16.mxu0 0
  %163 = vmatmul.mubr.bf16.gmra.mrb[0].mxu0 %v128
  %v164 = vpop.f32.mrb[0].mxu0
  %v165 = vadd.f32 %v90, %v164
  %v166 = vpop.f32.mrb[0].mxu0
  %v167 = vadd.f32 %v92, %v166
  %v168 = vpop.f32.mrb[0].mxu0
  %v169 = vpop.f32.mrb[0].mxu0
  %170 = vdwg.mxu0
  %v171 = vrot.slane %v165, 4
  %v172 = vadd.f32 %v165, %v171
  %v173 = vrot.slane %v172, 2
  %v174 = vadd.f32 %v172, %v173
  %v175 = vrot.slane %v174, 1
  %v176 = vadd.f32 %v174, %v175
  %v177 = vrot.slane %v167, 4
  %v178 = vadd.f32 %v167, %v177
  %v179 = vrot.slane %v178, 2
  %v180 = vadd.f32 %v178, %v179
  %v181 = vrot.slane %v180, 1
  %v182 = vadd.f32 %v180, %v181
  %v183 = vmul.f32 %v176, 0.125
  %v184 = vmul.f32 %v182, 0.125
  %v185 = vmul.f32 %v165, %v165
  %v186 = vmul.f32 %v167, %v167
  %v187 = vrot.slane %v185, 4
  %v188 = vadd.f32 %v185, %v187
  %v189 = vrot.slane %v188, 2
  %v190 = vadd.f32 %v188, %v189
  %v191 = vrot.slane %v190, 1
  %v192 = vadd.f32 %v190, %v191
  %v193 = vrot.slane %v186, 4
  %v194 = vadd.f32 %v186, %v193
  %v195 = vrot.slane %v194, 2
  %v196 = vadd.f32 %v194, %v195
  %v197 = vrot.slane %v196, 1
  %v198 = vadd.f32 %v196, %v197
  %v199 = vmul.f32 %v192, 0.125
  %v200 = vmul.f32 %v198, 0.125
  %v201 = vmul.f32 %v183, %v183
  %v202 = vmul.f32 %v184, %v184
  %v203 = vsub.f32 %v199, %v201
  %v204 = vsub.f32 %v200, %v202
  %v205 = vmax.f32 %v203, 0.0
  %v206 = vmax.f32 %v204, 0.0
  %v207 = vld [vmem:[%s5] ss:$8 sm:$0x3]
  %v208 = vadd.f32 %v205, 1e-05
  %v209 = vadd.f32 %v206, 1e-05
  %v210 = vrsqrt.pop %v208
  %v211 = vrsqrt.pop %v209
  %v214 = vcombine.low %v210, %v211
  %v216 = vunpack.c.l.s4 1966171168
  %v217 = vunpack.c.0.s8 %v216
  %v218 = vlaneseq
  %v219 = vshrl.u32 %v218, 7
  %v220 = vsub.s32 %v217, %v219
  %v221 = vrot.slane %v214, %v220
  %v223 = vunpack.c.l.s4 1966171168
  %v224 = vunpack.c.0.s8 %v223
  %v225 = vlaneseq
  %v226 = vshrl.u32 %v225, 7
  %v227 = vsub.s32 %v224, %v226
  %v228 = vrot.slane %v221, %v227
  %v230 = vmul.f32 %v207, %v228
  %s231 = scalar_lea.vmem %s5, 1
  %v232 = vld [vmem:[%s231] ss:$8 sm:$0x3]
  %v234 = vlaneseq
  %v235 = vshrl.u32 %v234, 7
  %v236 = vsub.s32 0, %v235
  %v237 = vrot.slane %v230, %v236
  %v238 = vlaneseq
  %v239 = vshrl.u32 %v238, 7
  %v240 = vsub.s32 1, %v239
  %v241 = vrot.slane %v230, %v240
  %v244 = vmul.f32 %v183, %v237
  %v245 = vmul.f32 %v184, %v241
  %v248 = vcombine.low %v244, %v245
  %v250 = vunpack.c.l.s4 1966171168
  %v251 = vunpack.c.0.s8 %v250
  %v252 = vlaneseq
  %v253 = vshrl.u32 %v252, 7
  %v254 = vsub.s32 %v251, %v253
  %v255 = vrot.slane %v248, %v254
  %v257 = vunpack.c.l.s4 1966171168
  %v258 = vunpack.c.0.s8 %v257
  %v259 = vlaneseq
  %v260 = vshrl.u32 %v259, 7
  %v261 = vsub.s32 %v258, %v260
  %v262 = vrot.slane %v255, %v261
  %v264 = vsub.f32 %v232, %v262
  %v265 = vmul.f32 %v165, %v237
  %v266 = vmul.f32 %v167, %v241
  %v268 = vlaneseq
  %v269 = vshrl.u32 %v268, 7
  %v270 = vsub.s32 0, %v269
  %v271 = vrot.slane %v264, %v270
  %v272 = vlaneseq
  %v273 = vshrl.u32 %v272, 7
  %v274 = vsub.s32 1, %v273
  %v275 = vrot.slane %v264, %v274
  %v278 = vadd.f32 %v265, %v271
  %v279 = vadd.f32 %v266, %v275
  %v280 = vmul.f32 %v278, 0.2
  %v281 = vmul.f32 %v279, 0.2
  %v282 = vmax.f32 %v278, %v280
  %v283 = vmax.f32 %v279, %v281
  %v284 = vpack.c.bf16 %v282, %v282
  %v285 = vpack.c.bf16 %v283, %v283
  %v286 = vld [vmem:[%s4] sm:$0xf]
  %v287 = vld [vmem:[%s4 + $0x4] sm:$0xf]
  %v288 = vld [vmem:[%s4 + $0x8] sm:$0xf]
  %v289 = vld [vmem:[%s4 + $0xc] sm:$0xf]
  %v290 = vld [vmem:[%s4 + $0x10] sm:$0xf]
  %v291 = vld [vmem:[%s4 + $0x14] sm:$0xf]
  %v292 = vld [vmem:[%s4 + $0x18] sm:$0xf]
  %v293 = vld [vmem:[%s4 + $0x1c] sm:$0xf]
  %v294 = vld [vmem:[%s4 + $0x20] sm:$0xf]
  %v295 = vld [vmem:[%s4 + $0x24] sm:$0xf]
  %v296 = vld [vmem:[%s4 + $0x28] sm:$0xf]
  %v297 = vld [vmem:[%s4 + $0x2c] sm:$0xf]
  %v298 = vld [vmem:[%s4 + $0x30] sm:$0xf]
  %v299 = vld [vmem:[%s4 + $0x34] sm:$0xf]
  %v300 = vld [vmem:[%s4 + $0x38] sm:$0xf]
  %v301 = vld [vmem:[%s4 + $0x3c] sm:$0xf]
  %v302 = vld [vmem:[%s4 + $0x40] sm:$0xf]
  %v303 = vld [vmem:[%s4 + $0x44] sm:$0xf]
  %v304 = vld [vmem:[%s4 + $0x48] sm:$0xf]
  %v305 = vld [vmem:[%s4 + $0x4c] sm:$0xf]
  %v306 = vld [vmem:[%s4 + $0x50] sm:$0xf]
  %v307 = vld [vmem:[%s4 + $0x54] sm:$0xf]
  %v308 = vld [vmem:[%s4 + $0x58] sm:$0xf]
  %v309 = vld [vmem:[%s4 + $0x5c] sm:$0xf]
  %v310 = vld [vmem:[%s4 + $0x60] sm:$0xf]
  %v311 = vld [vmem:[%s4 + $0x64] sm:$0xf]
  %v312 = vld [vmem:[%s4 + $0x68] sm:$0xf]
  %v313 = vld [vmem:[%s4 + $0x6c] sm:$0xf]
  %v314 = vld [vmem:[%s4 + $0x70] sm:$0xf]
  %v315 = vld [vmem:[%s4 + $0x74] sm:$0xf]
  %v316 = vld [vmem:[%s4 + $0x78] sm:$0xf]
  %v317 = vld [vmem:[%s4 + $0x7c] sm:$0xf]
  %v350 = vunpack.c.l.b16 %v286
  %v351 = vunpack.c.l.b16 %v287
  %v352 = vunpack.c.l.b16 %v288
  %v353 = vunpack.c.l.b16 %v289
  %v354 = vunpack.c.l.b16 %v290
  %v355 = vunpack.c.l.b16 %v291
  %v356 = vunpack.c.l.b16 %v292
  %v357 = vunpack.c.l.b16 %v293
  %v358 = vunpack.c.l.b16 %v294
  %v359 = vunpack.c.l.b16 %v295
  %v360 = vunpack.c.l.b16 %v296
  %v361 = vunpack.c.l.b16 %v297
  %v362 = vunpack.c.l.b16 %v298
  %v363 = vunpack.c.l.b16 %v299
  %v364 = vunpack.c.l.b16 %v300
  %v365 = vunpack.c.l.b16 %v301
  %v366 = vunpack.c.l.b16 %v302
  %v367 = vunpack.c.l.b16 %v303
  %v368 = vunpack.c.l.b16 %v304
  %v369 = vunpack.c.l.b16 %v305
  %v370 = vunpack.c.l.b16 %v306
  %v371 = vunpack.c.l.b16 %v307
  %v372 = vunpack.c.l.b16 %v308
  %v373 = vunpack.c.l.b16 %v309
  %v374 = vunpack.c.l.b16 %v310
  %v375 = vunpack.c.l.b16 %v311
  %v376 = vunpack.c.l.b16 %v312
  %v377 = vunpack.c.l.b16 %v313
  %v378 = vunpack.c.l.b16 %v314
  %v379 = vunpack.c.l.b16 %v315
  %v380 = vunpack.c.l.b16 %v316
  %v381 = vunpack.c.l.b16 %v317
  %v382 = vpack.c.b16 %v351, %v350
  %v383 = vpack.c.b16 %v353, %v352
  %v384 = vpack.c.b16 %v355, %v354
  %v385 = vpack.c.b16 %v357, %v356
  %v386 = vpack.c.b16 %v359, %v358
  %v387 = vpack.c.b16 %v361, %v360
  %v388 = vpack.c.b16 %v363, %v362
  %v389 = vpack.c.b16 %v365, %v364
  %v390 = vpack.c.b16 %v367, %v366
  %v391 = vpack.c.b16 %v369, %v368
  %v392 = vpack.c.b16 %v371, %v370
  %v393 = vpack.c.b16 %v373, %v372
  %v394 = vpack.c.b16 %v375, %v374
  %v395 = vpack.c.b16 %v377, %v376
  %v396 = vpack.c.b16 %v379, %v378
  %v397 = vpack.c.b16 %v381, %v380
  %414 = vmatprep.subr.bf16.mxu0 0
  %415 = vmatpush1.bf16.msra.mxu0 %v382
  %416 = vmatprep.subr.bf16.mxu0 0
  %417 = vmatpush1.bf16.msra.mxu0 %v383
  %418 = vmatprep.subr.bf16.mxu0 0
  %419 = vmatpush1.bf16.msra.mxu0 %v384
  %420 = vmatprep.subr.bf16.mxu0 0
  %421 = vmatpush1.bf16.msra.mxu0 %v385
  %422 = vmatprep.subr.bf16.mxu0 0
  %423 = vmatpush1.bf16.msra.mxu0 %v386
  %424 = vmatprep.subr.bf16.mxu0 0
  %425 = vmatpush1.bf16.msra.mxu0 %v387
  %426 = vmatprep.subr.bf16.mxu0 0
  %427 = vmatpush1.bf16.msra.mxu0 %v388
  %428 = vmatprep.subr.bf16.mxu0 0
  %429 = vmatpush1.bf16.msra.mxu0 %v389
  %430 = vmatprep.subr.bf16.mxu0 0
  %431 = vmatpush1.bf16.msra.mxu0 %v390
  %432 = vmatprep.subr.bf16.mxu0 0
  %433 = vmatpush1.bf16.msra.mxu0 %v391
  %434 = vmatprep.subr.bf16.mxu0 0
  %435 = vmatpush1.bf16.msra.mxu0 %v392
  %436 = vmatprep.subr.bf16.mxu0 0
  %437 = vmatpush1.bf16.msra.mxu0 %v393
  %438 = vmatprep.subr.bf16.mxu0 0
  %439 = vmatpush1.bf16.msra.mxu0 %v394
  %440 = vmatprep.subr.bf16.mxu0 0
  %441 = vmatpush1.bf16.msra.mxu0 %v395
  %442 = vmatprep.subr.bf16.mxu0 0
  %443 = vmatpush1.bf16.msra.mxu0 %v396
  %444 = vmatprep.subr.bf16.mxu0 0
  %445 = vmatpush1.bf16.msra.mxu0 %v397
  %446 = vmatprep.mubr.bf16.mxu0 %v285
  %447 = vmatmul.mubr.bf16.gmra.mrb[0].mxu0 %v284
  %v448 = vpop.f32.mrb[0].mxu0
  %v449 = vadd.f32 0.0, %v448
  %v450 = vpop.f32.mrb[0].mxu0
  %v451 = vpop.f32.mrb[0].mxu0
  %v452 = vpop.f32.mrb[0].mxu0
  %453 = vdwg.mxu0
  %vm454 = vcmask 523264
  %v455 = vsel %vm454, %v449, 0.0
  %v456 = vrot.slane %v455, 4
  %v457 = vadd.f32 %v455, %v456
  %v458 = vrot.slane %v457, 2
  %v459 = vadd.f32 %v457, %v458
  %v460 = vrot.slane %v459, 1
  %v461 = vadd.f32 %v459, %v460
  %v462 = vmul.f32 %v461, 0.125
  %v463 = vmul.f32 %v449, %v449
  %v464 = vsel %vm454, %v463, 0.0
  %v465 = vrot.slane %v464, 4
  %v466 = vadd.f32 %v464, %v465
  %v467 = vrot.slane %v466, 2
  %v468 = vadd.f32 %v466, %v467
  %v469 = vrot.slane %v468, 1
  %v470 = vadd.f32 %v468, %v469
  %v471 = vmul.f32 %v470, 0.125
  %v472 = vmul.f32 %v462, %v462
  %v473 = vsub.f32 %v471, %v472
  %v474 = vmax.f32 %v473, 0.0
  %v475 = vld [vmem:[%s5 + $0x2] ss:$0 sm:$0xff]
  %v476 = vadd.f32 %v474, 1e-05
  %v477 = vrsqrt.pop %v476
  %v478 = vmul.f32 %v475, %v477
  %v479 = vld [vmem:[%s5 + $0x3] ss:$0 sm:$0xff]
  %v480 = vmul.f32 %v462, %v478
  %v481 = vsub.f32 %v479, %v480
  %v482 = vmul.f32 %v449, %v478
  %v483 = vadd.f32 %v482, %v481
  %v484 = vmul.f32 %v483, 0.2
  %v485 = vmax.f32 %v483, %v484
  %v486 = vld [vmem:[%s5 + $0x4] ss:$0 sm:$0xff]
  %v487 = vmul.f32 %v485, %v486
  %v488 = vsel %vm454, %v487, 0.0
  %489 = vadd.xlane.f32.xlu0 %v488
  %v490 = vpop.xlane.xlu0 %489
  %v491 = vld [vmem:[%s5 + $0x5] ss:$0 sm:$0xff]
  %v492 = vadd.f32 %v490, %v491
  %v493 = vsub.f32 0.0, %v492
  %v494 = vmul.f32 %v493, 1.442695
  %v495 = vpow.pop %v494
  %v496 = vadd.f32 %v495, 1.0
  %v497 = vrcp.pop %v496
  %vm498 = vcmask 7168
  %499 = vst.msk [vmem:[%s6] sm:$0xff] %vm498, %v497
  // Predicated region
  $region26: #{tpu_custom_call.1} parent=0 // pred_check
    _
  $region27: #{tpu_custom_call.1} parent=0 // pred_check_branch
    %501 = sbr.rel (0) target = $region29
  $region28: #{tpu_custom_call.1} parent=0 // pred_region
    _
  $region29: #{tpu_custom_call.1} parent=0 // pred_fallthru
    _
  // Predicated region
  $region30: #{tpu_custom_call.1} parent=0 // pred_check
    _
  $region31: #{tpu_custom_call.1} parent=0 // pred_check_branch
    %503 = sbr.rel (0) target = $region33
  $region32: #{tpu_custom_call.1} parent=0 // pred_region
    _
  $region33: #{tpu_custom_call.1} parent=0 // pred_fallthru
    _

</llo_original>
